<compile_context>
chip_gen: v7x
topology: tpu7x:2x2x1
jax: 0.10.0
libtpu: 0.0.40
codegen_flags: <defaults>
</compile_context>

<pallas_src>
import functools

import jax
import jax.numpy as jnp
from jax.experimental import pallas as pl
from jax.experimental.pallas import tpu as pltpu


def _round_up(x, m):
    return ((x + m - 1) // m) * m


def _device_kind():
    try:
        return jax.devices()[0].device_kind.lower()
    except Exception:
        return ""


def _resolve_act_dtype():
    # bf16 tanh only pays off where the EUP has a bf16 path (v6e / v7x);
    # v5e and older stay in f32 to avoid pointless conversions.
    kind = _device_kind()
    return jnp.bfloat16 if ("v6" in kind or "v7" in kind) else jnp.float32


def _resolve_dim_semantics():
    # Only CORE_PARALLEL actually shards a grid axis across v7x's 2 TensorCores;
    # plain "parallel" vs "arbitrary" doesn't change codegen on 1-TC chips.
    kind = _device_kind()
    return (pltpu.CORE_PARALLEL,) if "v7" in kind else ("parallel",)


def _cypher_kernel(x_ref, w1_ref, b1_ref, w2_ref, b2_ref, o_ref, *, act_dtype):
    # x_ref : (TB, K)   f32   (K = n_chars, full-extent -> narrow HBM stream)
    # w1_ref: (K, H)    bf16
    # b1_ref: (1, H)    f32
    # w2_ref: (H, Np)   bf16  (Np = 128, lane-dense)
    # b2_ref: (1, Np)   f32
    # o_ref : (TB, Np)  bf16  (lane-dense, unmasked store)
    x = x_ref[...].astype(w1_ref.dtype)                      # in-kernel bf16 cast
    h = jnp.dot(x, w1_ref[...], preferred_element_type=jnp.float32)
    h = jnp.tanh((h + b1_ref[...]).astype(act_dtype))
    y = jnp.dot(h.astype(w2_ref.dtype), w2_ref[...],
                preferred_element_type=jnp.float32)
    y = jnp.tanh((y + b2_ref[...]).astype(act_dtype))
    o_ref[...] = y.astype(o_ref.dtype)


def cypher_net_forward(x, w1, b1, w2, b2, *, block_b=4096, act_dtype=None,
                       out_dtype=jnp.bfloat16, trim_output=True):
    """x: (B, n_chars) f32. w1: (n_chars, H), b1: (1, H), w2: (H, n_chars),
    b2: (1, n_chars) -- weights stored (in, out), i.e. transposed vs torch
    Linear.weight, so the kernel computes x @ W + b."""
    B, n_chars = x.shape
    K, H = w1.shape
    assert K == n_chars and w2.shape == (H, n_chars)
    assert b1.shape == (1, H) and b2.shape == (1, n_chars)

    if act_dtype is None:
        act_dtype = _resolve_act_dtype()

    mm_dtype = jnp.bfloat16
    Np = _round_up(n_chars, 128)            # lane-dense output feature dim

    # Only the (tiny) weights / biases are touched in the wrapper; x goes in raw.
    w1_c = w1.astype(mm_dtype)
    b1_c = b1.astype(jnp.float32)
    w2_c = jnp.pad(w2, ((0, 0), (0, Np - n_chars))).astype(mm_dtype)
    b2_c = jnp.pad(b2, ((0, 0), (0, Np - n_chars))).astype(jnp.float32)

    out_itemsize = jnp.dtype(out_dtype).itemsize
    cost = pl.CostEstimate(
        flops=2 * B * (n_chars * H + H * Np),
        transcendentals=B * (H + Np),
        bytes_accessed=(B * n_chars * 4                      # x (f32 in)
                        + (n_chars * H + H * Np) * 2         # weights (bf16)
                        + (H + Np) * 4                       # biases (f32)
                        + B * Np * out_itemsize),            # output
    )

    kernel = functools.partial(_cypher_kernel, act_dtype=act_dtype)
    grid_steps = pl.cdiv(B, block_b)

    if grid_steps == 1:
        # Small batch: no grid at all -- one full-extent VMEM block per operand.
        out = pl.pallas_call(
            kernel,
            out_shape=jax.ShapeDtypeStruct((B, Np), out_dtype),
            in_specs=[pl.BlockSpec(memory_space=pltpu.MemorySpace.VMEM)] * 5,
            out_specs=pl.BlockSpec(memory_space=pltpu.MemorySpace.VMEM),
            cost_estimate=cost,
        )(x, w1_c, b1_c, w2_c, b2_c)
    else:
        # Large batch: tile only the batch axis; weights / biases keep block
        # index (0, 0) so they stay VMEM-resident across grid steps. The last
        # (ragged) tile is handled by Pallas edge-block masking -- no batch pad.
        out = pl.pallas_call(
            kernel,
            out_shape=jax.ShapeDtypeStruct((B, Np), out_dtype),
            grid=(grid_steps,),
            in_specs=[
                pl.BlockSpec((block_b, n_chars), lambda i: (i, 0)),
                pl.BlockSpec((n_chars, H), lambda i: (0, 0)),
                pl.BlockSpec((1, H), lambda i: (0, 0)),
                pl.BlockSpec((H, Np), lambda i: (0, 0)),
                pl.BlockSpec((1, Np), lambda i: (0, 0)),
            ],
            out_specs=pl.BlockSpec((block_b, Np), lambda i: (i, 0)),
            compiler_params=pltpu.CompilerParams(
                dimension_semantics=_resolve_dim_semantics()),
            cost_estimate=cost,
        )(x, w1_c, b1_c, w2_c, b2_c)

    if trim_output:
        # NOTE: for perf-critical use pass trim_output=False and fuse this
        # slice into the consumer -- it re-reads the whole output stream.
        return out[:, :n_chars]
    return out


def _reference(x, w1, b1, w2, b2, *, mm_dtype=jnp.bfloat16,
               act_dtype=jnp.float32, out_dtype=jnp.bfloat16):
    """Plain-JAX reference matching the kernel's numerics."""
    h = jnp.dot(x.astype(mm_dtype), w1.astype(mm_dtype),
                preferred_element_type=jnp.float32)
    h = jnp.tanh((h + b1).astype(act_dtype))
    y = jnp.dot(h.astype(mm_dtype), w2.astype(mm_dtype),
                preferred_element_type=jnp.float32)
    y = jnp.tanh((y + b2).astype(act_dtype))
    return y.astype(out_dtype)


def init_params(key, n_chars=26, hidden=128):
    """Deterministic init mimicking nn.Linear's U(-1/sqrt(fan_in), 1/sqrt(fan_in))."""
    k1, k2, k3, k4 = jax.random.split(key, 4)
    lim1 = 1.0 / jnp.sqrt(jnp.float32(n_chars))
    lim2 = 1.0 / jnp.sqrt(jnp.float32(hidden))
    # stored as (in, out) so the kernel does x @ w (== x @ W.T in torch terms)
    w1 = jax.random.uniform(k1, (n_chars, hidden), jnp.float32, -lim1, lim1)
    b1 = jax.random.uniform(k2, (1, hidden), jnp.float32, -lim1, lim1)
    w2 = jax.random.uniform(k3, (hidden, n_chars), jnp.float32, -lim2, lim2)
    b2 = jax.random.uniform(k4, (1, n_chars), jnp.float32, -lim2, lim2)
    return w1, b1, w2, b2


if __name__ == "__main__":
    n_chars = 26
    hidden = 128

    key = jax.random.PRNGKey(0)
    kx, kp, kx2 = jax.random.split(key, 3)
    w1, b1, w2, b2 = init_params(kp, n_chars=n_chars, hidden=hidden)
    act_dtype = _resolve_act_dtype()

    # Small batch -> single full-extent VMEM block (no grid).
    x_small = jax.random.normal(kx, (8, n_chars), jnp.float32)
    out_small = jax.block_until_ready(
        cypher_net_forward(x_small, w1, b1, w2, b2, act_dtype=act_dtype))
    ref_small = _reference(x_small, w1, b1, w2, b2, act_dtype=act_dtype)
    ref_small_f32 = _reference(x_small, w1, b1, w2, b2,
                               mm_dtype=jnp.float32, act_dtype=jnp.float32,
                               out_dtype=jnp.float32)
    assert out_small.shape == (8, n_chars)
    assert out_small.dtype == jnp.bfloat16
    assert jnp.allclose(out_small.astype(jnp.float32),
                        ref_small.astype(jnp.float32), atol=1e-2, rtol=1e-2)
    assert jnp.allclose(out_small.astype(jnp.float32), ref_small_f32,
                        atol=5e-2, rtol=5e-2)

    # Larger batch with a ragged last tile -> batched grid path (cdiv grid,
    # resident weights, lane-dense bf16 output).
    x_big = jax.random.normal(kx2, (300, n_chars), jnp.float32)
    out_big = jax.block_until_ready(
        cypher_net_forward(x_big, w1, b1, w2, b2, block_b=128,
                           act_dtype=act_dtype))
    ref_big = _reference(x_big, w1, b1, w2, b2, act_dtype=act_dtype)
    assert out_big.shape == (300, n_chars)
    assert jnp.allclose(out_big.astype(jnp.float32),
                        ref_big.astype(jnp.float32), atol=1e-2, rtol=1e-2)

    print("KERNEL_OK")
</pallas_src>

<mosaic_0001>
module attributes {stable_mosaic.version = 11 : i64} {
  func.func @_cypher_kernel(%arg0: memref<8x26xf32, #tpu.memory_space<vmem>>, %arg1: memref<26x128xbf16, #tpu.memory_space<vmem>>, %arg2: memref<1x128xf32, #tpu.memory_space<vmem>>, %arg3: memref<128x128xbf16, #tpu.memory_space<vmem>>, %arg4: memref<1x128xf32, #tpu.memory_space<vmem>>, %arg5: memref<8x128xbf16, #tpu.memory_space<vmem>>) attributes {dimension_semantics = [], scalar_prefetch = 0 : i64, scratch_operands = 0 : i64, tpu.core_type = #tpu.core_type<tc>} {
    %c0 = arith.constant 0 : index
    %c0_0 = arith.constant 0 : index
    %0 = vector.load %arg0[%c0, %c0_0] : memref<8x26xf32, #tpu.memory_space<vmem>>, vector<8x26xf32>
    %1 = arith.truncf %0 : vector<8x26xf32> to vector<8x26xbf16>
    %c0_1 = arith.constant 0 : index
    %c0_2 = arith.constant 0 : index
    %2 = vector.load %arg1[%c0_1, %c0_2] : memref<26x128xbf16, #tpu.memory_space<vmem>>, vector<26x128xbf16>
    %cst = arith.constant dense<0.000000e+00> : vector<8x128xf32>
    %3 = tpu.matmul %1, %2, %cst {dimension_numbers = #tpu.dot_dimension_numbers<[1], [0], [0], [1], [0, 0, 1, 1], [], []>} : vector<8x26xbf16>, vector<26x128xbf16>, vector<8x128xf32> -> vector<8x128xf32>
    %c0_3 = arith.constant 0 : index
    %c0_4 = arith.constant 0 : index
    %4 = vector.load %arg2[%c0_3, %c0_4] : memref<1x128xf32, #tpu.memory_space<vmem>>, vector<1x128xf32>
    %5 = vector.broadcast %4 : vector<1x128xf32> to vector<8x128xf32>
    %6 = arith.addf %3, %5 : vector<8x128xf32>
    %7 = math.tanh %6 : vector<8x128xf32>
    %8 = arith.truncf %7 : vector<8x128xf32> to vector<8x128xbf16>
    %c0_5 = arith.constant 0 : index
    %c0_6 = arith.constant 0 : index
    %9 = vector.load %arg3[%c0_5, %c0_6] : memref<128x128xbf16, #tpu.memory_space<vmem>>, vector<128x128xbf16>
    %cst_7 = arith.constant dense<0.000000e+00> : vector<8x128xf32>
    %10 = tpu.matmul %8, %9, %cst_7 {dimension_numbers = #tpu.dot_dimension_numbers<[1], [0], [0], [1], [0, 0, 1, 1], [], []>} : vector<8x128xbf16>, vector<128x128xbf16>, vector<8x128xf32> -> vector<8x128xf32>
    %c0_8 = arith.constant 0 : index
    %c0_9 = arith.constant 0 : index
    %11 = vector.load %arg4[%c0_8, %c0_9] : memref<1x128xf32, #tpu.memory_space<vmem>>, vector<1x128xf32>
    %12 = vector.broadcast %11 : vector<1x128xf32> to vector<8x128xf32>
    %13 = arith.addf %10, %12 : vector<8x128xf32>
    %14 = math.tanh %13 : vector<8x128xf32>
    %15 = arith.truncf %14 : vector<8x128xf32> to vector<8x128xbf16>
    %c0_10 = arith.constant 0 : index
    %c0_11 = arith.constant 0 : index
    %16 = vector.load %arg5[%c0_10, %c0_11] : memref<8x128xbf16, #tpu.memory_space<vmem>>, vector<8x128xbf16>
    tpu.vector_store %arg5[%c0_10, %c0_11], %15 {strides = array<i32>} : memref<8x128xbf16, #tpu.memory_space<vmem>>, vector<8x128xbf16>,
    return
  }
}

</mosaic_0001>

<llo_original>
// kernel: tpu_custom_call.1
$region0: #{tpu_custom_call.1}
  #allocation0 [shape = 'u32[]', space=smem, size = 0x4, offset = 0x4, fixed_abs, tag = 'smem constant byte address 0x4 - core index']
  #allocation1 [shape = 'u32[144,128]{1,0:T(1,128)}', space=vmem, size = 0x12000, scoped, tag = 'internal scratch']
  %s0 = inlined_call_operand.hbm [shape: f32[8,26], index: 0, kind: input, shape index: {}]
  %s1 = inlined_call_operand.hbm [shape: bf16[26,128], index: 1, kind: input, shape index: {}]
  %s2 = inlined_call_operand.vmem [shape: f32[1,128], index: 2, kind: input, shape index: {}]
  %s3 = inlined_call_operand.hbm [shape: bf16[128,128], index: 3, kind: input, shape index: {}]
  %s4 = inlined_call_operand.vmem [shape: f32[1,128], index: 4, kind: input, shape index: {}]
  %s5 = inlined_call_operand.hbm [shape: bf16[8,128], index: 5, kind: output, shape index: {}]
  %s6 = sld [smem:[#allocation0]]
  $region42: #{tpu_custom_call.1} parent=0
    _
  %s8 = ssub.s32 1, %s6
  %s9 = scalar_select 0, %s8, %s6
  $region1: #{tpu_custom_call.1} parent=0
    #allocation2 [shape = 'u8[4096]{0}', space=vmem, size = 0x1000, scoped, tag = 'input window, operand 0, single buffered']
    #allocation3 [shape = 's32[1]{0}', space=sflag, size = 0x4, scoped, tag = 'scoped memory for tpu_custom_call.1']
    #allocation4 [shape = 's32[1]{0}', space=sflag, size = 0x4, scoped, tag = 'scoped memory for tpu_custom_call.1']
    #allocation5 [shape = 'u8[8192]{0}', space=vmem, size = 0x2000, scoped, tag = 'input window, operand 1, single buffered']
    #allocation6 [shape = 's32[1]{0}', space=sflag, size = 0x4, scoped, tag = 'scoped memory for tpu_custom_call.1']
    #allocation7 [shape = 'u8[32768]{0}', space=vmem, size = 0x8000, scoped, tag = 'input window, operand 3, single buffered']
    #allocation8 [shape = 'u8[2048]{0}', space=vmem, size = 0x800, scoped, tag = 'output window, operand 0, single buffered']
    %10 = vsyncpa [#allocation3], 0
    %11 = vsyncpa [#allocation6], 0
    %12 = vsyncpa [#allocation4], 0
    // Predicated region
    $region2: #{tpu_custom_call.1} parent=1 // pred_check
      _
    $region3: #{tpu_custom_call.1} parent=1 // pred_check_branch
      %14 = sbr.rel (0) target = $region5
    $region4: #{tpu_custom_call.1} parent=1 // pred_region
      %s16 = ssub.s32 128, 128
      %17 = vsyncadd [#allocation3], %s16
      %s19 = sshll.u32 [#allocation2], 4
      %s20 = int_to_ptr.vmem [resolvable:$true] %s19
      %22 = dma.hbm_to_vmem [thread:$0]  %s0, 128, %s20, [#allocation3]
    $region5: #{tpu_custom_call.1} parent=1 // pred_fallthru
      _
    // Predicated region
    $region6: #{tpu_custom_call.1} parent=1 // pred_check
      _
    $region7: #{tpu_custom_call.1} parent=1 // pred_check_branch
      %24 = sbr.rel (0) target = $region9
    $region8: #{tpu_custom_call.1} parent=1 // pred_region
      %s26 = ssub.s32 256, 256
      %27 = vsyncadd [#allocation6], %s26
      %s28 = sshll.u32 [#allocation5], 4
      %s29 = int_to_ptr.vmem [resolvable:$true] %s28
      %34 = dma.hbm_to_vmem [thread:$0]  %s1, 256, %s29, [#allocation6], 64, 64, 4
    $region9: #{tpu_custom_call.1} parent=1 // pred_fallthru
      _
    // Predicated region
    $region10: #{tpu_custom_call.1} parent=1 // pred_check
      _
    $region11: #{tpu_custom_call.1} parent=1 // pred_check_branch
      %36 = sbr.rel (0) target = $region13
    $region12: #{tpu_custom_call.1} parent=1 // pred_region
      _
    $region13: #{tpu_custom_call.1} parent=1 // pred_fallthru
      _
    // Predicated region
    $region14: #{tpu_custom_call.1} parent=1 // pred_check
      _
    $region15: #{tpu_custom_call.1} parent=1 // pred_check_branch
      %38 = sbr.rel (0) target = $region17
    $region16: #{tpu_custom_call.1} parent=1 // pred_region
      %s40 = ssub.s32 1024, 1024
      %41 = vsyncadd [#allocation6], %s40
      %s42 = sshll.u32 [#allocation7], 4
      %s43 = int_to_ptr.vmem [resolvable:$true] %s42
      %48 = dma.hbm_to_vmem [thread:$0]  %s3, 1024, %s43, [#allocation6], 64, 64, 4
    $region17: #{tpu_custom_call.1} parent=1 // pred_fallthru
      _
    // Predicated region
    $region18: #{tpu_custom_call.1} parent=1 // pred_check
      _
    $region19: #{tpu_custom_call.1} parent=1 // pred_check_branch
      %50 = sbr.rel (0) target = $region21
    $region20: #{tpu_custom_call.1} parent=1 // pred_region
      _
    $region21: #{tpu_custom_call.1} parent=1 // pred_fallthru
      _
    // Predicated region
    $region22: #{tpu_custom_call.1} parent=1 // pred_check
      _
    $region23: #{tpu_custom_call.1} parent=1 // pred_check_branch
      %52 = sbr.rel (0) target = $region25
    $region24: #{tpu_custom_call.1} parent=1 // pred_region
      %53 = dma.done [#allocation3], 128
    $region25: #{tpu_custom_call.1} parent=1 // pred_fallthru
      _
    // Predicated region
    $region26: #{tpu_custom_call.1} parent=1 // pred_check
      _
    $region27: #{tpu_custom_call.1} parent=1 // pred_check_branch
      %55 = sbr.rel (0) target = $region29
    $region28: #{tpu_custom_call.1} parent=1 // pred_region
      %56 = dma.done [#allocation6], 256
    $region29: #{tpu_custom_call.1} parent=1 // pred_fallthru
      _
    // Predicated region
    $region30: #{tpu_custom_call.1} parent=1 // pred_check
      _
    $region31: #{tpu_custom_call.1} parent=1 // pred_check_branch
      %58 = sbr.rel (0) target = $region33
    $region32: #{tpu_custom_call.1} parent=1 // pred_region
      %59 = dma.done [#allocation6], 1024
    $region33: #{tpu_custom_call.1} parent=1 // pred_fallthru
      _
    %v61 = vld [vmem:[#allocation2] sm:$0xff]
    %v62 = vpack.c.bf16 %v61, %v61
    %v63 = vld [vmem:[#allocation5] sm:$0xf]
    %v64 = vld [vmem:[#allocation5 + $0x4] sm:$0xf]
    %v65 = vld [vmem:[#allocation5 + $0x8] sm:$0xf]
    %v66 = vld [vmem:[#allocation5 + $0xc] sm:$0x1]
    %v67 = vld [vmem:[%s2] sm:$0x1]
    %v69 = vlaneseq
    %v70 = vshrl.u32 %v69, 7
    %v71 = vsub.s32 0, %v70
    %v72 = vrot.slane %v67, %v71
    %v78 = vunpack.c.l.b16 %v63
    %v79 = vunpack.c.l.b16 %v64
    %v80 = vunpack.c.l.b16 %v65
    %v81 = vunpack.c.l.b16 %v66
    %v82 = vpack.c.b16 %v79, %v78
    %v83 = vpack.c.b16 %v81, %v80
    %vm85 = vcmask 211968
    %v87 = vsel %vm85, %v62, 0
    %vm89 = vcmask 1044480
    %v91 = vsel %vm89, %v83, 0
    %93 = vmatprep.subr.bf16.mxu0 0
    %94 = vmatpush1.bf16.msra.mxu0 %v82
    %95 = vmatprep.subr.bf16.mxu0 0
    %96 = vmatpush1.bf16.msra.mxu0 %v91
    %97 = vmatprep.subr.bf16.mxu0 0
    %98 = vmatpush1.bf16.msra.mxu0 0
    %99 = vmatprep.subr.bf16.mxu0 0
    %100 = vmatpush1.bf16.msra.mxu0 0
    %101 = vmatprep.subr.bf16.mxu0 0
    %102 = vmatpush1.bf16.msra.mxu0 0
    %103 = vmatprep.subr.bf16.mxu0 0
    %104 = vmatpush1.bf16.msra.mxu0 0
    %105 = vmatprep.subr.bf16.mxu0 0
    %106 = vmatpush1.bf16.msra.mxu0 0
    %107 = vmatprep.subr.bf16.mxu0 0
    %108 = vmatpush1.bf16.msra.mxu0 0
    %109 = vmatprep.subr.bf16.mxu0 0
    %110 = vmatpush1.bf16.msra.mxu0 0
    %111 = vmatprep.subr.bf16.mxu0 0
    %112 = vmatpush1.bf16.msra.mxu0 0
    %113 = vmatprep.subr.bf16.mxu0 0
    %114 = vmatpush1.bf16.msra.mxu0 0
    %115 = vmatprep.subr.bf16.mxu0 0
    %116 = vmatpush1.bf16.msra.mxu0 0
    %117 = vmatprep.subr.bf16.mxu0 0
    %118 = vmatpush1.bf16.msra.mxu0 0
    %119 = vmatprep.subr.bf16.mxu0 0
    %120 = vmatpush1.bf16.msra.mxu0 0
    %121 = vmatprep.subr.bf16.mxu0 0
    %122 = vmatpush1.bf16.msra.mxu0 0
    %123 = vmatprep.subr.bf16.mxu0 0
    %124 = vmatpush1.bf16.msra.mxu0 0
    %125 = vmatprep.mubr.bf16.mxu0 0
    %126 = vmatmul.mubr.bf16.gmra.mrb[0].mxu0 %v87
    %v127 = vpop.f32.mrb[0].mxu0
    %v128 = vadd.f32 %v72, %v127
    %v129 = vpop.f32.mrb[0].mxu0
    %v130 = vpop.f32.mrb[0].mxu0
    %v131 = vpop.f32.mrb[0].mxu0
    %132 = vdwg.mxu0
    %v133 = vtanh.pop %v128
    %v134 = vpack.c.bf16 %v133, %v133
    %v135 = vld [vmem:[#allocation7] sm:$0xf]
    %v136 = vld [vmem:[#allocation7 + $0x4] sm:$0xf]
    %v137 = vld [vmem:[#allocation7 + $0x8] sm:$0xf]
    %v138 = vld [vmem:[#allocation7 + $0xc] sm:$0xf]
    %v139 = vld [vmem:[#allocation7 + $0x10] sm:$0xf]
    %v140 = vld [vmem:[#allocation7 + $0x14] sm:$0xf]
    %v141 = vld [vmem:[#allocation7 + $0x18] sm:$0xf]
    %v142 = vld [vmem:[#allocation7 + $0x1c] sm:$0xf]
    %v143 = vld [vmem:[#allocation7 + $0x20] sm:$0xf]
    %v144 = vld [vmem:[#allocation7 + $0x24] sm:$0xf]
    %v145 = vld [vmem:[#allocation7 + $0x28] sm:$0xf]
    %v146 = vld [vmem:[#allocation7 + $0x2c] sm:$0xf]
    %v147 = vld [vmem:[#allocation7 + $0x30] sm:$0xf]
    %v148 = vld [vmem:[#allocation7 + $0x34] sm:$0xf]
    %v149 = vld [vmem:[#allocation7 + $0x38] sm:$0xf]
    %v150 = vld [vmem:[#allocation7 + $0x3c] sm:$0xf]
    %v151 = vld [vmem:[%s4] sm:$0x1]
    %v153 = vlaneseq
    %v154 = vshrl.u32 %v153, 7
    %v155 = vsub.s32 0, %v154
    %v156 = vrot.slane %v151, %v155
    %v174 = vunpack.c.l.b16 %v135
    %v175 = vunpack.c.l.b16 %v136
    %v176 = vunpack.c.l.b16 %v137
    %v177 = vunpack.c.l.b16 %v138
    %v178 = vunpack.c.l.b16 %v139
    %v179 = vunpack.c.l.b16 %v140
    %v180 = vunpack.c.l.b16 %v141
    %v181 = vunpack.c.l.b16 %v142
    %v182 = vunpack.c.l.b16 %v143
    %v183 = vunpack.c.l.b16 %v144
    %v184 = vunpack.c.l.b16 %v145
    %v185 = vunpack.c.l.b16 %v146
    %v186 = vunpack.c.l.b16 %v147
    %v187 = vunpack.c.l.b16 %v148
    %v188 = vunpack.c.l.b16 %v149
    %v189 = vunpack.c.l.b16 %v150
    %v190 = vpack.c.b16 %v175, %v174
    %v191 = vpack.c.b16 %v177, %v176
    %v192 = vpack.c.b16 %v179, %v178
    %v193 = vpack.c.b16 %v181, %v180
    %v194 = vpack.c.b16 %v183, %v182
    %v195 = vpack.c.b16 %v185, %v184
    %v196 = vpack.c.b16 %v187, %v186
    %v197 = vpack.c.b16 %v189, %v188
    %206 = vmatprep.subr.bf16.mxu0 0
    %207 = vmatpush1.bf16.msra.mxu0 %v190
    %208 = vmatprep.subr.bf16.mxu0 0
    %209 = vmatpush1.bf16.msra.mxu0 %v191
    %210 = vmatprep.subr.bf16.mxu0 0
    %211 = vmatpush1.bf16.msra.mxu0 %v192
    %212 = vmatprep.subr.bf16.mxu0 0
    %213 = vmatpush1.bf16.msra.mxu0 %v193
    %214 = vmatprep.subr.bf16.mxu0 0
    %215 = vmatpush1.bf16.msra.mxu0 %v194
    %216 = vmatprep.subr.bf16.mxu0 0
    %217 = vmatpush1.bf16.msra.mxu0 %v195
    %218 = vmatprep.subr.bf16.mxu0 0
    %219 = vmatpush1.bf16.msra.mxu0 %v196
    %220 = vmatprep.subr.bf16.mxu0 0
    %221 = vmatpush1.bf16.msra.mxu0 %v197
    %222 = vmatprep.subr.bf16.mxu0 0
    %223 = vmatpush1.bf16.msra.mxu0 0
    %224 = vmatprep.subr.bf16.mxu0 0
    %225 = vmatpush1.bf16.msra.mxu0 0
    %226 = vmatprep.subr.bf16.mxu0 0
    %227 = vmatpush1.bf16.msra.mxu0 0
    %228 = vmatprep.subr.bf16.mxu0 0
    %229 = vmatpush1.bf16.msra.mxu0 0
    %230 = vmatprep.subr.bf16.mxu0 0
    %231 = vmatpush1.bf16.msra.mxu0 0
    %232 = vmatprep.subr.bf16.mxu0 0
    %233 = vmatpush1.bf16.msra.mxu0 0
    %234 = vmatprep.subr.bf16.mxu0 0
    %235 = vmatpush1.bf16.msra.mxu0 0
    %236 = vmatprep.subr.bf16.mxu0 0
    %237 = vmatpush1.bf16.msra.mxu0 0
    %238 = vmatprep.mubr.bf16.mxu0 0
    %239 = vmatmul.mubr.bf16.gmra.mrb[0].mxu0 %v134
    %v240 = vpop.f32.mrb[0].mxu0
    %v241 = vadd.f32 %v156, %v240
    %v242 = vpop.f32.mrb[0].mxu0
    %v243 = vpop.f32.mrb[0].mxu0
    %v244 = vpop.f32.mrb[0].mxu0
    %245 = vdwg.mxu0
    %v246 = vtanh.pop %v241
    %v247 = vpack.c.bf16 %v246, %v246
    %248 = vst [vmem:[#allocation8] sm:$0xf] %v247
    // Predicated region
    $region34: #{tpu_custom_call.1} parent=1 // pred_check
      _
    $region35: #{tpu_custom_call.1} parent=1 // pred_check_branch
      %250 = sbr.rel (0) target = $region37
    $region36: #{tpu_custom_call.1} parent=1 // pred_region
      %s252 = ssub.s32 64, 64
      %253 = vsyncadd [#allocation4], %s252
      %s255 = sshll.u32 [#allocation8], 4
      %s256 = int_to_ptr.vmem [resolvable:$true] %s255
      %258 = dma.vmem_to_hbm [thread:$0]  %s256, 64, %s5, [#allocation4]
    $region37: #{tpu_custom_call.1} parent=1 // pred_fallthru
      _
    // Predicated region
    $region38: #{tpu_custom_call.1} parent=1 // pred_check
      _
    $region39: #{tpu_custom_call.1} parent=1 // pred_check_branch
      %260 = sbr.rel (0) target = $region41
    $region40: #{tpu_custom_call.1} parent=1 // pred_region
      %261 = dma.done [#allocation4], 64
    $region41: #{tpu_custom_call.1} parent=1 // pred_fallthru
      _
    %262 = vsyncpa [#allocation3], 1
    %263 = vsyncpa [#allocation6], 1
    %264 = vsyncpa [#allocation4], 1

</llo_original>
